<compile_context>
chip_gen: v5e
topology: v5e:2x2
jax: 0.10.0
libtpu: 0.0.40
codegen_flags: <defaults>
</compile_context>

<pallas_src>
import jax
import jax.numpy as jnp
from jax.experimental import pallas as pl
from jax.experimental.pallas import tpu as pltpu


# ----------------------------------------------------------------------------
# Kernel
# ----------------------------------------------------------------------------
def _pa_layer_kernel(x_ref, w1_ref, b1_ref, w2_ref, b2_ref, out_ref, y_acc):
    """One (tb, W) row-block; channels streamed along grid axis 1.

    x_ref  : (tb, W, tc) native-layout block of x
    y_acc  : (tb, W)     running channel max (VMEM scratch, resident over C)
    out_ref: (tb, W)
    """
    c = pl.program_id(1)

    @pl.when(c == 0)
    def _init():
        y_acc[...] = jnp.full_like(y_acc, -jnp.inf)

    # Channel max over the native trailing axis (XLU cross-lane reduce; fully
    # hidden under the x DMA on this HBM-bound kernel).
    y_acc[...] = jnp.maximum(
        y_acc[...], jnp.max(x_ref[...].astype(jnp.float32), axis=-1))

    @pl.when(c == pl.num_programs(1) - 1)
    def _finalize():
        y = y_acc[...]
        # fc[0]: Linear(W -> H) + ReLU  (tiny MXU matmul, f32 accumulate)
        h = jnp.dot(y, w1_ref[...], preferred_element_type=jnp.float32) + b1_ref[...]
        h = jnp.maximum(h, 0.0)
        # fc[2]: Linear(H -> W)
        o = jnp.dot(h, w2_ref[...], preferred_element_type=jnp.float32) + b2_ref[...]
        out_ref[...] = o.astype(out_ref.dtype)


# ----------------------------------------------------------------------------
# Tiling helpers
# ----------------------------------------------------------------------------
def _round_up(x, m):
    return ((x + m - 1) // m) * m


def _pad_tile_bytes(rows, cols, itemsize):
    """VMEM bytes of a 2-D tile after (8, 128) sublane/lane padding."""
    return _round_up(max(rows, 1), 8) * _round_up(max(cols, 1), 128) * itemsize


def _device_vmem_capacity_bytes():
    """Physical VMEM of the local TPU; conservative 64 MiB (v7x) fallback."""
    try:
        info = pltpu.get_tpu_info()
        for name in ("vmem_capacity_bytes", "vmem_size_bytes", "vmem_bytes"):
            cap = getattr(info, name, None)
            if cap:
                return int(cap)
    except Exception:
        pass
    return 64 * 1024 * 1024


def _pick_tc(C, W, itemsize, budget):
    """Channel tile: C itself if an 8-row block fits, else a multiple-of-128
    divisor of C (never ragged along C, so no garbage can reach the max)."""
    def blk_bytes(tc):
        return 8 * _round_up(W, 8) * _round_up(tc, 128) * itemsize

    if blk_bytes(C) <= budget:
        return C
    best = None
    tc = 128
    while tc < C:
        if C % tc == 0 and blk_bytes(tc) <= budget:
            best = tc
        tc += 128
    return best if best is not None else C


def _pick_tb(B, rows_cap, want_two_blocks):
    """Row tile: full B, or a multiple of 8 (preferring a divisor of B).
    rows_cap is a multiple of 8 (>= 8)."""
    split = want_two_blocks and B >= 16
    if B <= rows_cap and not split:
        return B                       # full-dim block is always legal
    cap = rows_cap
    if split:                          # guarantee >= 2 blocks on 2-TC parts
        cap = min(cap, max(8, _round_up((B + 1) // 2, 8)))
    cap = max(cap, 8)
    best, d, lim = 0, 8, min(cap, B)
    while d <= lim:                    # largest multiple-of-8 divisor of B
        if B % d == 0:
            best = d
        d += 8
    if best:
        return best
    # Ragged fallback: multiple-of-8 tiles; out-of-bounds output rows are
    # masked by Pallas and the padded rows never contaminate valid rows.
    return min(cap, _round_up(B, 8))


# ----------------------------------------------------------------------------
# Wrapper
# ----------------------------------------------------------------------------
def pa_layer(x, w1_t, b1, w2_t, b2, *, tile_b=None, tile_c=None):
    """x: (B, W, C).  w1_t: (W, H), b1: (H,), w2_t: (H, W), b2: (W,).
    Returns (B, W, 1), matching the PyTorch PALayer forward."""
    B, W, C = x.shape
    H = w1_t.shape[1]
    assert w1_t.shape == (W, H) and w2_t.shape == (H, W)
    assert b1.shape == (H,) and b2.shape == (W,)

    x_itemsize = jnp.dtype(x.dtype).itemsize
    w_itemsize = jnp.dtype(w1_t.dtype).itemsize
    out_itemsize = x_itemsize

    vmem_cap = _device_vmem_capacity_bytes()
    # Per-buffer x-block budget (padded bytes). Bigger tiles on 128-MiB parts.
    x_budget = vmem_cap // 4 if vmem_cap >= 100 * 1024 * 1024 else vmem_cap // 5
    # 64-MiB VMEM => v7x => 2 TensorCores: make sure the parallel axis splits.
    want_two_b_blocks = vmem_cap <= 96 * 1024 * 1024

    # --- channel tile: C itself, or a multiple-of-128 divisor of C.
    if tile_c is not None:
        tc = tile_c
        assert tc == C or (tc % 128 == 0 and C % tc == 0), (
            "tile_c must be C or a multiple-of-128 divisor of C")
    else:
        tc = _pick_tc(C, W, x_itemsize, x_budget)

    # --- row tile: multiple of 8 (or full B), sized from the padded budget.
    padded_row_bytes = _round_up(W, 8) * _round_up(tc, 128) * x_itemsize
    if tile_b is not None:
        tb = tile_b
        assert tb == B or tb % 8 == 0, "tile_b must be B or a multiple of 8"
    else:
        rows_cap = max(8, (x_budget // padded_row_bytes) // 8 * 8)
        tb = _pick_tb(B, rows_cap, want_two_b_blocks)

    grid = (pl.cdiv(B, tb), pl.cdiv(C, tc))

    # --- padded VMEM footprint and scoped limit (never below the footprint).
    x_blk = tb * padded_row_bytes
    out_blk = _pad_tile_bytes(tb, W, out_itemsize)
    acc_blk = _pad_tile_bytes(tb, W, 4)
    wt_blk = (_pad_tile_bytes(W, H, w_itemsize) + _pad_tile_bytes(1, H, w_itemsize)
              + _pad_tile_bytes(H, W, w_itemsize) + _pad_tile_bytes(1, W, w_itemsize))
    footprint = 2 * x_blk + 2 * out_blk + acc_blk + 2 * wt_blk
    vmem_limit = max(int(1.5 * footprint), 32 * 1024 * 1024)
    vmem_limit = min(vmem_limit, vmem_cap - 8 * 1024 * 1024)
    vmem_limit = max(vmem_limit, footprint + 2 * 1024 * 1024)
    vmem_limit = min(vmem_limit, vmem_cap - 2 * 1024 * 1024)

    # Advisory cost: HBM-bound, FLOP-cheap.
    wt_raw_bytes = (W * H + H + H * W + W) * w_itemsize
    cost = pl.CostEstimate(
        flops=2 * B * (W * H + H * W),
        transcendentals=0,
        bytes_accessed=B * W * C * x_itemsize + B * W * out_itemsize + wt_raw_bytes,
    )

    out = pl.pallas_call(
        _pa_layer_kernel,
        out_shape=jax.ShapeDtypeStruct((B, W), x.dtype),
        grid_spec=pltpu.PrefetchScalarGridSpec(
            num_scalar_prefetch=0,
            grid=grid,
            in_specs=[
                pl.BlockSpec((tb, W, tc), lambda i, c: (i, 0, c)),   # x (B,W,C)
                pl.BlockSpec((W, H), lambda i, c: (0, 0)),           # w1_t (resident)
                pl.BlockSpec((1, H), lambda i, c: (0, 0)),           # b1
                pl.BlockSpec((H, W), lambda i, c: (0, 0)),           # w2_t
                pl.BlockSpec((1, W), lambda i, c: (0, 0)),           # b2
            ],
            out_specs=pl.BlockSpec((tb, W), lambda i, c: (i, 0)),    # resident over C
            scratch_shapes=[pltpu.VMEM((tb, W), jnp.float32)],
        ),
        compiler_params=pltpu.CompilerParams(
            dimension_semantics=("parallel", "arbitrary"),
            vmem_limit_bytes=int(vmem_limit),
        ),
        cost_estimate=cost,
    )(x, w1_t, b1.reshape(1, H), w2_t, b2.reshape(1, W))

    return out.reshape(B, W, 1)


# ----------------------------------------------------------------------------
# Parameters / reference
# ----------------------------------------------------------------------------
def init_params(key, dim_pa, reduction_pa, dtype=jnp.float32):
    """Deterministic synthetic init matching nn.Linear shapes.

    PyTorch: fc[0].weight (H, W), fc[0].bias (H,), fc[2].weight (W, H), fc[2].bias (W,).
    Weights are returned pre-transposed for y @ W^T matmuls.
    """
    H = dim_pa // reduction_pa
    k1, k2, k3, k4 = jax.random.split(key, 4)
    bound1 = 1.0 / (dim_pa ** 0.5)
    bound2 = 1.0 / (H ** 0.5)
    w1 = jax.random.uniform(k1, (H, dim_pa), dtype, -bound1, bound1)   # fc[0].weight
    b1 = jax.random.uniform(k2, (H,), dtype, -bound1, bound1)          # fc[0].bias
    w2 = jax.random.uniform(k3, (dim_pa, H), dtype, -bound2, bound2)   # fc[2].weight
    b2 = jax.random.uniform(k4, (dim_pa,), dtype, -bound2, bound2)     # fc[2].bias
    return w1.T, b1, w2.T, b2   # (W,H), (H,), (H,W), (W,)


def pa_layer_ref(x, w1_t, b1, w2_t, b2):
    """Pure-JAX reference reproducing the PyTorch forward."""
    y = jnp.max(x, axis=2)                       # (B, W)
    h = jnp.maximum(y @ w1_t + b1, 0.0)          # (B, H)
    o = h @ w2_t + b2                            # (B, W)
    return o[..., None]                          # (B, W, 1)


if __name__ == "__main__":
    DIM_PA = 64        # w (point/attention dimension)
    REDUCTION_PA = 4   # hidden = 16

    key = jax.random.PRNGKey(0)
    kx1, kx2, kp = jax.random.split(key, 3)
    w1_t, b1, w2_t, b2 = init_params(kp, DIM_PA, REDUCTION_PA)

    # Test 1: small shape, auto tiling (single grid step on both axes, tb == B).
    x1 = jax.random.normal(kx1, (2, DIM_PA, 32), jnp.float32)
    out1 = pa_layer(x1, w1_t, b1, w2_t, b2)
    jax.block_until_ready(out1)
    ref1 = pa_layer_ref(x1, w1_t, b1, w2_t, b2)
    assert out1.shape == (2, DIM_PA, 1)
    assert jnp.allclose(out1, ref1, atol=1e-5, rtol=1e-5)

    # Test 2: forced multi-step grid (2 row-blocks x 2 channel-chunks) to
    # exercise the pipelined parallel B axis and the resident channel-max
    # accumulator (tile_c must be a multiple of 128 in the native layout).
    x2 = jax.random.normal(kx2, (16, DIM_PA, 256), jnp.float32)
    out2 = pa_layer(x2, w1_t, b1, w2_t, b2, tile_b=8, tile_c=128)
    jax.block_until_ready(out2)
    ref2 = pa_layer_ref(x2, w1_t, b1, w2_t, b2)
    assert out2.shape == (16, DIM_PA, 1)
    assert jnp.allclose(out2, ref2, atol=1e-5, rtol=1e-5)

    print("KERNEL_OK")
</pallas_src>

<mosaic_0001>
module attributes {stable_mosaic.version = 11 : i64} {
  func.func @_pa_layer_kernel(%arg0: i32, %arg1: i32, %arg2: memref<2x64x32xf32, #tpu.memory_space<vmem>>, %arg3: memref<64x16xf32, #tpu.memory_space<vmem>>, %arg4: memref<1x16xf32, #tpu.memory_space<vmem>>, %arg5: memref<16x64xf32, #tpu.memory_space<vmem>>, %arg6: memref<1x64xf32, #tpu.memory_space<vmem>>, %arg7: memref<2x64xf32, #tpu.memory_space<vmem>>, %arg8: memref<2x64xf32, #tpu.memory_space<vmem>>) attributes {dimension_semantics = [#tpu.dimension_semantics<parallel>, #tpu.dimension_semantics<arbitrary>], iteration_bounds = array<i64: 1, 1>, scalar_prefetch = 0 : i64, scratch_operands = 1 : i64, tpu.core_type = #tpu.core_type<tc>, window_params = [{transform_indices = @transform_0, window_bounds = array<i64: 2, 64, 32>}, {pipeline_mode = #tpu.pipeline_mode<synchronous>, transform_indices = @transform_1, window_bounds = array<i64: 64, 16>}, {pipeline_mode = #tpu.pipeline_mode<synchronous>, transform_indices = @transform_2, window_bounds = array<i64: 1, 16>}, {pipeline_mode = #tpu.pipeline_mode<synchronous>, transform_indices = @transform_3, window_bounds = array<i64: 16, 64>}, {pipeline_mode = #tpu.pipeline_mode<synchronous>, transform_indices = @transform_4, window_bounds = array<i64: 1, 64>}, {transform_indices = @transform_5, window_bounds = array<i64: 2, 64>}]} {
    %c0_i32 = arith.constant 0 : i32
    %0 = arith.cmpi eq, %arg1, %c0_i32 : i32
    %1 = arith.extui %0 : i1 to i32
    %c0_i32_0 = arith.constant 0 : i32
    %2 = arith.cmpi ne, %1, %c0_i32_0 : i32
    scf.if %2 {
      %cst_9 = arith.constant 0xFF800000 : f32
      %11 = vector.broadcast %cst_9 : f32 to vector<2x64xf32>
      %c0_10 = arith.constant 0 : index
      %c0_11 = arith.constant 0 : index
      %12 = vector.load %arg8[%c0_10, %c0_11] : memref<2x64xf32, #tpu.memory_space<vmem>>, vector<2x64xf32>
      tpu.vector_store %arg8[%c0_10, %c0_11], %11 {strides = array<i32>} : memref<2x64xf32, #tpu.memory_space<vmem>>, vector<2x64xf32>,
    } else {
    }
    %c0 = arith.constant 0 : index
    %c0_1 = arith.constant 0 : index
    %3 = vector.load %arg8[%c0, %c0_1] : memref<2x64xf32, #tpu.memory_space<vmem>>, vector<2x64xf32>
    %c0_2 = arith.constant 0 : index
    %c0_3 = arith.constant 0 : index
    %c0_4 = arith.constant 0 : index
    %4 = vector.load %arg2[%c0_2, %c0_3, %c0_4] : memref<2x64x32xf32, #tpu.memory_space<vmem>>, vector<2x64x32xf32>
    %cst = arith.constant dense<0xFF800000> : vector<2x64xf32>
    %5 = vector.multi_reduction <maximumf>, %4, %cst [2] : vector<2x64x32xf32> to vector<2x64xf32>
    %6 = arith.maximumf %3, %5 : vector<2x64xf32>
    %c0_5 = arith.constant 0 : index
    %c0_6 = arith.constant 0 : index
    %7 = vector.load %arg8[%c0_5, %c0_6] : memref<2x64xf32, #tpu.memory_space<vmem>>, vector<2x64xf32>
    tpu.vector_store %arg8[%c0_5, %c0_6], %6 {strides = array<i32>} : memref<2x64xf32, #tpu.memory_space<vmem>>, vector<2x64xf32>,
    %c0_i32_7 = arith.constant 0 : i32
    %8 = arith.cmpi eq, %arg1, %c0_i32_7 : i32
    %9 = arith.extui %8 : i1 to i32
    %c0_i32_8 = arith.constant 0 : i32
    %10 = arith.cmpi ne, %9, %c0_i32_8 : i32
    scf.if %10 {
      %c0_9 = arith.constant 0 : index
      %c0_10 = arith.constant 0 : index
      %11 = vector.load %arg8[%c0_9, %c0_10] : memref<2x64xf32, #tpu.memory_space<vmem>>, vector<2x64xf32>
      %c0_11 = arith.constant 0 : index
      %c0_12 = arith.constant 0 : index
      %12 = vector.load %arg3[%c0_11, %c0_12] : memref<64x16xf32, #tpu.memory_space<vmem>>, vector<64x16xf32>
      %cst_13 = arith.constant dense<0.000000e+00> : vector<2x16xf32>
      %13 = tpu.matmul %11, %12, %cst_13 {dimension_numbers = #tpu.dot_dimension_numbers<[1], [0], [0], [1], [0, 0, 1, 1], [], []>} : vector<2x64xf32>, vector<64x16xf32>, vector<2x16xf32> -> vector<2x16xf32>
      %c0_14 = arith.constant 0 : index
      %c0_15 = arith.constant 0 : index
      %14 = vector.load %arg4[%c0_14, %c0_15] : memref<1x16xf32, #tpu.memory_space<vmem>>, vector<1x16xf32>
      %15 = vector.broadcast %14 : vector<1x16xf32> to vector<2x16xf32>
      %16 = arith.addf %13, %15 : vector<2x16xf32>
      %cst_16 = arith.constant 0.000000e+00 : f32
      %17 = vector.broadcast %cst_16 : f32 to vector<2x16xf32>
      %18 = arith.maximumf %16, %17 : vector<2x16xf32>
      %c0_17 = arith.constant 0 : index
      %c0_18 = arith.constant 0 : index
      %19 = vector.load %arg5[%c0_17, %c0_18] : memref<16x64xf32, #tpu.memory_space<vmem>>, vector<16x64xf32>
      %cst_19 = arith.constant dense<0.000000e+00> : vector<2x64xf32>
      %20 = tpu.matmul %18, %19, %cst_19 {dimension_numbers = #tpu.dot_dimension_numbers<[1], [0], [0], [1], [0, 0, 1, 1], [], []>} : vector<2x16xf32>, vector<16x64xf32>, vector<2x64xf32> -> vector<2x64xf32>
      %c0_20 = arith.constant 0 : index
      %c0_21 = arith.constant 0 : index
      %21 = vector.load %arg6[%c0_20, %c0_21] : memref<1x64xf32, #tpu.memory_space<vmem>>, vector<1x64xf32>
      %22 = vector.broadcast %21 : vector<1x64xf32> to vector<2x64xf32>
      %23 = arith.addf %20, %22 : vector<2x64xf32>
      %c0_22 = arith.constant 0 : index
      %c0_23 = arith.constant 0 : index
      %24 = vector.load %arg7[%c0_22, %c0_23] : memref<2x64xf32, #tpu.memory_space<vmem>>, vector<2x64xf32>
      tpu.vector_store %arg7[%c0_22, %c0_23], %23 {strides = array<i32>} : memref<2x64xf32, #tpu.memory_space<vmem>>, vector<2x64xf32>,
    } else {
    }
    return
  }
  func.func @transform_0(%arg0: i32, %arg1: i32) -> (i32, i32, i32) {
    %c0_i32 = arith.constant 0 : i32
    %c0_i32_0 = arith.constant 0 : i32
    return %arg0, %c0_i32, %arg1 : i32, i32, i32
  }
  func.func @transform_1(%arg0: i32, %arg1: i32) -> (i32, i32) {
    %c0_i32 = arith.constant 0 : i32
    %c0_i32_0 = arith.constant 0 : i32
    %c0_i32_1 = arith.constant 0 : i32
    return %c0_i32, %c0_i32_0 : i32, i32
  }
  func.func @transform_2(%arg0: i32, %arg1: i32) -> (i32, i32) {
    %c0_i32 = arith.constant 0 : i32
    %c0_i32_0 = arith.constant 0 : i32
    %c0_i32_1 = arith.constant 0 : i32
    return %c0_i32, %c0_i32_0 : i32, i32
  }
  func.func @transform_3(%arg0: i32, %arg1: i32) -> (i32, i32) {
    %c0_i32 = arith.constant 0 : i32
    %c0_i32_0 = arith.constant 0 : i32
    %c0_i32_1 = arith.constant 0 : i32
    return %c0_i32, %c0_i32_0 : i32, i32
  }
  func.func @transform_4(%arg0: i32, %arg1: i32) -> (i32, i32) {
    %c0_i32 = arith.constant 0 : i32
    %c0_i32_0 = arith.constant 0 : i32
    %c0_i32_1 = arith.constant 0 : i32
    return %c0_i32, %c0_i32_0 : i32, i32
  }
  func.func @transform_5(%arg0: i32, %arg1: i32) -> (i32, i32) {
    %c0_i32 = arith.constant 0 : i32
    %c0_i32_0 = arith.constant 0 : i32
    return %arg0, %c0_i32 : i32, i32
  }
}

</mosaic_0001>

<llo_original>
// kernel: tpu_custom_call.1
$region0: #{tpu_custom_call.1}
  #allocation0 [shape = 'u32[]', space=smem, size = 0x4, offset = 0x4, fixed_abs, tag = 'smem constant byte address 0x4 - core index']
  #allocation1 [shape = 'u32[72,128]{1,0:T(1,128)}', space=vmem, size = 0x9000, scoped, tag = 'internal scratch']
  #allocation2 [shape = 'f32[2,64]{1,0:T(2,128)}', space=vmem, size = 0x400, scoped, tag = 'scratch operand']
  %s0 = inlined_call_operand.vmem [shape: f32[2,64,32], index: 0, kind: input, shape index: {}]
  %s1 = inlined_call_operand.vmem [shape: f32[64,16], index: 1, kind: input, shape index: {}]
  %s2 = inlined_call_operand.vmem [shape: f32[1,16], index: 2, kind: input, shape index: {}]
  %s3 = inlined_call_operand.vmem [shape: f32[16,64], index: 3, kind: input, shape index: {}]
  %s4 = inlined_call_operand.vmem [shape: f32[1,64], index: 4, kind: input, shape index: {}]
  %s5 = inlined_call_operand.hbm [shape: f32[2,64], index: 5, kind: output, shape index: {}]
  %s6 = sld [smem:[#allocation0]]
  $region38: #{tpu_custom_call.1} parent=0
    _
  %s8 = ssub.s32 1, %s6
  %s9 = scalar_select 0, %s8, %s6
  $region1: #{tpu_custom_call.1} parent=0
    #allocation3 [shape = 'u8[1024]{0}', space=vmem, size = 0x400, scoped, tag = 'output window, operand 0, single buffered']
    #allocation4 [shape = 's32[1]{0}', space=sflag, size = 0x4, scoped, tag = 'scoped memory for tpu_custom_call.1']
    %10 = vsyncpa [#allocation4], 0
    // Predicated region
    $region2: #{tpu_custom_call.1} parent=1 // pred_check
      _
    $region3: #{tpu_custom_call.1} parent=1 // pred_check_branch
      %12 = sbr.rel (0) target = $region5
    $region4: #{tpu_custom_call.1} parent=1 // pred_region
      _
    $region5: #{tpu_custom_call.1} parent=1 // pred_fallthru
      _
    // Predicated region
    $region6: #{tpu_custom_call.1} parent=1 // pred_check
      _
    $region7: #{tpu_custom_call.1} parent=1 // pred_check_branch
      %14 = sbr.rel (0) target = $region9
    $region8: #{tpu_custom_call.1} parent=1 // pred_region
      _
    $region9: #{tpu_custom_call.1} parent=1 // pred_fallthru
      _
    // Predicated region
    $region10: #{tpu_custom_call.1} parent=1 // pred_check
      _
    $region11: #{tpu_custom_call.1} parent=1 // pred_check_branch
      %16 = sbr.rel (0) target = $region13
    $region12: #{tpu_custom_call.1} parent=1 // pred_region
      _
    $region13: #{tpu_custom_call.1} parent=1 // pred_fallthru
      _
    // Predicated region
    $region14: #{tpu_custom_call.1} parent=1 // pred_check
      _
    $region15: #{tpu_custom_call.1} parent=1 // pred_check_branch
      %18 = sbr.rel (0) target = $region17
    $region16: #{tpu_custom_call.1} parent=1 // pred_region
      _
    $region17: #{tpu_custom_call.1} parent=1 // pred_fallthru
      _
    // Predicated region
    $region18: #{tpu_custom_call.1} parent=1 // pred_check
      _
    $region19: #{tpu_custom_call.1} parent=1 // pred_check_branch
      %20 = sbr.rel (0) target = $region21
    $region20: #{tpu_custom_call.1} parent=1 // pred_region
      _
    $region21: #{tpu_custom_call.1} parent=1 // pred_fallthru
      _
    %p21 = scmp.eq.s32.totalorder 0, 0
    // Predicated region
    $region22: #{tpu_custom_call.1} parent=1 // pred_check
      %p22 = pneg %p21
    $region23: #{tpu_custom_call.1} parent=1 // pred_check_branch
      %24 = sbr.rel (%p22) target = $region25
    $region24: #{tpu_custom_call.1} parent=1 // pred_region
      %vm25 = vcmask 517120
      %26 = vst.msk [vmem:[#allocation2] sm:$0x3] %vm25, -inf
    $region25: #{tpu_custom_call.1} parent=1 // pred_fallthru
      _
    %v27 = vld [vmem:[#allocation2] sm:$0x3]
    %v28 = vld [vmem:[%s0] sm:$0xff]
    %v29 = vld [vmem:[%s0 + $0x8] sm:$0xff]
    %v30 = vld [vmem:[%s0 + $0x10] sm:$0xff]
    %v31 = vld [vmem:[%s0 + $0x18] sm:$0xff]
    %v32 = vld [vmem:[%s0 + $0x20] sm:$0xff]
    %v33 = vld [vmem:[%s0 + $0x28] sm:$0xff]
    %v34 = vld [vmem:[%s0 + $0x30] sm:$0xff]
    %v35 = vld [vmem:[%s0 + $0x38] sm:$0xff]
    %v36 = vld [vmem:[%s0 + $0x40] sm:$0xff]
    %v37 = vld [vmem:[%s0 + $0x48] sm:$0xff]
    %v38 = vld [vmem:[%s0 + $0x50] sm:$0xff]
    %v39 = vld [vmem:[%s0 + $0x58] sm:$0xff]
    %v40 = vld [vmem:[%s0 + $0x60] sm:$0xff]
    %v41 = vld [vmem:[%s0 + $0x68] sm:$0xff]
    %v42 = vld [vmem:[%s0 + $0x70] sm:$0xff]
    %v43 = vld [vmem:[%s0 + $0x78] sm:$0xff]
    %vm44 = vcmask 261120
    %v45 = vsel %vm44, %v28, -inf
    %46 = vmax.xlane.f32.xlu0 %v45
    %v47 = vpop.xlane.xlu0 %46
    %v48 = vsel %vm44, %v29, -inf
    %49 = vmax.xlane.f32.xlu0 %v48
    %v50 = vpop.xlane.xlu0 %49
    %v51 = vsel %vm44, %v30, -inf
    %52 = vmax.xlane.f32.xlu0 %v51
    %v53 = vpop.xlane.xlu0 %52
    %v54 = vsel %vm44, %v31, -inf
    %55 = vmax.xlane.f32.xlu0 %v54
    %v56 = vpop.xlane.xlu0 %55
    %v57 = vsel %vm44, %v32, -inf
    %58 = vmax.xlane.f32.xlu0 %v57
    %v59 = vpop.xlane.xlu0 %58
    %v60 = vsel %vm44, %v33, -inf
    %61 = vmax.xlane.f32.xlu0 %v60
    %v62 = vpop.xlane.xlu0 %61
    %v63 = vsel %vm44, %v34, -inf
    %64 = vmax.xlane.f32.xlu0 %v63
    %v65 = vpop.xlane.xlu0 %64
    %v66 = vsel %vm44, %v35, -inf
    %67 = vmax.xlane.f32.xlu0 %v66
    %v68 = vpop.xlane.xlu0 %67
    %v69 = vsel %vm44, %v36, -inf
    %70 = vmax.xlane.f32.xlu0 %v69
    %v71 = vpop.xlane.xlu0 %70
    %v72 = vsel %vm44, %v37, -inf
    %73 = vmax.xlane.f32.xlu0 %v72
    %v74 = vpop.xlane.xlu0 %73
    %v75 = vsel %vm44, %v38, -inf
    %76 = vmax.xlane.f32.xlu0 %v75
    %v77 = vpop.xlane.xlu0 %76
    %v78 = vsel %vm44, %v39, -inf
    %79 = vmax.xlane.f32.xlu0 %v78
    %v80 = vpop.xlane.xlu0 %79
    %v81 = vsel %vm44, %v40, -inf
    %82 = vmax.xlane.f32.xlu0 %v81
    %v83 = vpop.xlane.xlu0 %82
    %v84 = vsel %vm44, %v41, -inf
    %85 = vmax.xlane.f32.xlu0 %v84
    %v86 = vpop.xlane.xlu0 %85
    %v87 = vsel %vm44, %v42, -inf
    %88 = vmax.xlane.f32.xlu0 %v87
    %v89 = vpop.xlane.xlu0 %88
    %v90 = vsel %vm44, %v43, -inf
    %91 = vmax.xlane.f32.xlu0 %v90
    %v92 = vpop.xlane.xlu0 %91
    %v109 = vlaneseq
    %v110 = vand.u32 %v109, 127
    %v111 = vperm.slane %v47, %v110
    %v112 = vadd.s32 %v110, 4294967288
    %v113 = vperm.slane %v50, %v112
    %vm114 = vcmask 130112
    %v115 = vsel %vm114, %v113, %v111
    %v116 = vadd.s32 %v110, 4294967280
    %v117 = vperm.slane %v53, %v116
    %vm118 = vcmask 195712
    %v119 = vsel %vm118, %v117, %v115
    %v120 = vadd.s32 %v110, 4294967272
    %v121 = vperm.slane %v56, %v120
    %vm122 = vcmask 261312
    %v123 = vsel %vm122, %v121, %v119
    %v124 = vadd.s32 %v110, 4294967264
    %v125 = vperm.slane %v59, %v124
    %vm126 = vcmask 326912
    %v127 = vsel %vm126, %v125, %v123
    %v128 = vadd.s32 %v110, 4294967256
    %v129 = vperm.slane %v62, %v128
    %vm130 = vcmask 392512
    %v131 = vsel %vm130, %v129, %v127
    %v132 = vadd.s32 %v110, 4294967248
    %v133 = vperm.slane %v65, %v132
    %vm134 = vcmask 458112
    %v135 = vsel %vm134, %v133, %v131
    %v136 = vadd.s32 %v110, 4294967240
    %v137 = vperm.slane %v68, %v136
    %vm138 = vcmask 523712
    %v139 = vsel %vm138, %v137, %v135
    %v140 = vperm.slane %v71, %v110
    %v141 = vperm.slane %v74, %v112
    %v142 = vsel %vm114, %v141, %v140
    %v143 = vperm.slane %v77, %v116
    %v144 = vsel %vm118, %v143, %v142
    %v145 = vperm.slane %v80, %v120
    %v146 = vsel %vm122, %v145, %v144
    %v147 = vperm.slane %v83, %v124
    %v148 = vsel %vm126, %v147, %v146
    %v149 = vperm.slane %v86, %v128
    %v150 = vsel %vm130, %v149, %v148
    %v151 = vperm.slane %v89, %v132
    %v152 = vsel %vm134, %v151, %v150
    %v153 = vperm.slane %v92, %v136
    %v154 = vsel %vm138, %v153, %v152
    %vm155 = vcmask 1041409
    %v156 = vsel %vm155, %v154, %v139
    %v158 = vmax.f32 %v27, %v156
    %vm159 = vcmask 517120
    %160 = vst.msk [vmem:[#allocation2] sm:$0x3] %vm159, %v158
    // Predicated region
    $region26: #{tpu_custom_call.1} parent=1 // pred_check
      %p161 = pneg %p21
    $region27: #{tpu_custom_call.1} parent=1 // pred_check_branch
      %163 = sbr.rel (%p161) target = $region29
    $region28: #{tpu_custom_call.1} parent=1 // pred_region
      %v164 = vld [vmem:[#allocation2] sm:$0x3]
      %v165 = vld [vmem:[%s1] sm:$0xff]
      %v166 = vld [vmem:[%s1 + $0x8] sm:$0xff]
      %v167 = vld [vmem:[%s1 + $0x10] sm:$0xff]
      %v168 = vld [vmem:[%s1 + $0x18] sm:$0xff]
      %v169 = vld [vmem:[%s1 + $0x20] sm:$0xff]
      %v170 = vld [vmem:[%s1 + $0x28] sm:$0xff]
      %v171 = vld [vmem:[%s1 + $0x30] sm:$0xff]
      %v172 = vld [vmem:[%s1 + $0x38] sm:$0xff]
      %v173 = vld [vmem:[%s2] sm:$0x1]
      %v175 = vperm.slane %v173, 0
      %vm177 = vcmask 523264
      %v179 = vsel %vm177, %v164, 0
      %181 = vmatpush.msra.mxu0 0.0
      %182 = vmatpush.msra.mxu0 0.0
      %183 = vmatpush.msra.mxu0 0.0
      %184 = vmatpush.msra.mxu0 0.0
      %185 = vmatpush.msra.mxu0 0.0
      %186 = vmatpush.msra.mxu0 0.0
      %187 = vmatpush.msra.mxu0 0.0
      %188 = vmatpush.msra.mxu0 0.0
      %189 = vmatpush.msra.mxu0 %v172
      %190 = vmatpush.msra.mxu0 %v171
      %191 = vmatpush.msra.mxu0 %v170
      %192 = vmatpush.msra.mxu0 %v169
      %193 = vmatpush.msra.mxu0 %v168
      %194 = vmatpush.msra.mxu0 %v167
      %195 = vmatpush.msra.mxu0 %v166
      %196 = vmatpush.msra.mxu0 %v165
      %197 = vmatmul.f32.gmra.mxu0 %v179
      %v198 = vpop.f32.mrf.mxu0
      %v199 = vadd.f32 %v175, %v198
      %200 = vdwg.mxu0
      %v201 = vmax.f32 %v199, 0.0
      %v202 = vld [vmem:[%s3] sm:$0xff]
      %v203 = vld [vmem:[%s3 + $0x8] sm:$0xff]
      %v204 = vld [vmem:[%s4] sm:$0x1]
      %v206 = vperm.slane %v204, 0
      %vm208 = vcmask 130048
      %v210 = vsel %vm208, %v201, 0
      %212 = vmatpush.msra.mxu0 0.0
      %213 = vmatpush.msra.mxu0 0.0
      %214 = vmatpush.msra.mxu0 0.0
      %215 = vmatpush.msra.mxu0 0.0
      %216 = vmatpush.msra.mxu0 0.0
      %217 = vmatpush.msra.mxu0 0.0
      %218 = vmatpush.msra.mxu0 0.0
      %219 = vmatpush.msra.mxu0 0.0
      %220 = vmatpush.msra.mxu0 0.0
      %221 = vmatpush.msra.mxu0 0.0
      %222 = vmatpush.msra.mxu0 0.0
      %223 = vmatpush.msra.mxu0 0.0
      %224 = vmatpush.msra.mxu0 0.0
      %225 = vmatpush.msra.mxu0 0.0
      %226 = vmatpush.msra.mxu0 %v203
      %227 = vmatpush.msra.mxu0 %v202
      %228 = vmatmul.f32.gmra.mxu0 %v210
      %v229 = vpop.f32.mrf.mxu0
      %v230 = vadd.f32 %v206, %v229
      %231 = vdwg.mxu0
      %232 = vst.msk [vmem:[#allocation3] sm:$0x3] %vm159, %v230
    $region29: #{tpu_custom_call.1} parent=1 // pred_fallthru
      _
    // Predicated region
    $region30: #{tpu_custom_call.1} parent=1 // pred_check
      _
    $region31: #{tpu_custom_call.1} parent=1 // pred_check_branch
      %234 = sbr.rel (0) target = $region33
    $region32: #{tpu_custom_call.1} parent=1 // pred_region
      %236 = vsyncadd [#allocation4], 0
      %s238 = sshll.u32 [#allocation3], 4
      %s239 = int_to_ptr.vmem [resolvable:$true] %s238
      %s240 = sshll.u32 %s5, 4
      %s241 = int_to_ptr.hbm [resolvable:$true] %s240
      %243 = dma.vmem_to_hbm [thread:$0]  %s239, 32, %s241, [#allocation4]
    $region33: #{tpu_custom_call.1} parent=1 // pred_fallthru
      _
    // Predicated region
    $region34: #{tpu_custom_call.1} parent=1 // pred_check
      _
    $region35: #{tpu_custom_call.1} parent=1 // pred_check_branch
      %245 = sbr.rel (0) target = $region37
    $region36: #{tpu_custom_call.1} parent=1 // pred_region
      %247 = dma.done [#allocation4], 32
    $region37: #{tpu_custom_call.1} parent=1 // pred_fallthru
      _
    %248 = vsyncpa [#allocation4], 1

</llo_original>
